<compile_context>
chip_gen: v7x
topology: tpu7x:2x2x1
jax: 0.10.0
libtpu: 0.0.40
codegen_flags: <defaults>
</compile_context>

<pallas_src>
import functools

import jax
import jax.numpy as jnp
from jax.experimental import pallas as pl
from jax.experimental.pallas import tpu as pltpu

# ---------------------------------------------------------------------------
# Config (small synthetic shapes consistent with the module's forward)
# ---------------------------------------------------------------------------
N, C_IN, H, W = 2, 4, 16, 16            # image: NCHW
NUM_CLASSES = 8                          # semantic classes
C_TOT = NUM_CLASSES + 1 + 2              # semantic + center(1) + offset(2) heads = 11
C_PAD = 16                               # heads/target lane width (== full array dim)
K_PAD = 16                               # contraction padding (bf16 sublane multiple)
TP_MAX = 8192                            # max rows per grid step (VMEM ~TP*320B x2buf)

# panoptic-deeplab style loss weights
W_SEM, W_CTR, W_OFF = 1.0, 200.0, 0.01

# target-slab lane layout (lane-aligned with the heads slab):
#   lanes 0..7  : one-hot(label)          lanes 9..10 : offset targets (y, x)
#   lane  8     : center target           lane  11    : valid flag (0 on pad rows)
_VALID_LANE = NUM_CLASSES + 3            # = 11


# ---------------------------------------------------------------------------
# Kernel 1 (inference): prediction heads = per-pixel linear projection (1x1 conv)
#   x:(TP, K_PAD) bf16 @ w:(K_PAD, C_PAD) bf16 + b:(1, C_PAD) f32 -> (TP, C_PAD) f32
# ---------------------------------------------------------------------------
def _heads_kernel(x_ref, w_ref, b_ref, o_ref):
    o_ref[...] = (
        jnp.dot(x_ref[...], w_ref[...], preferred_element_type=jnp.float32)
        + b_ref[...]
    )


# ---------------------------------------------------------------------------
# Kernel 2 (training): fused heads + loss partial sums.
#   Emits the heads block and, in the same grid step, the per-block
#   [sum CE, sum SE, sum |off err|] partials into a lane-dense (1, 8, 128) tile.
#   All reductions run on full-width tiles with lane masks (no column slices).
# ---------------------------------------------------------------------------
def _fused_kernel(x_ref, w_ref, b_ref, t_ref, o_ref, part_ref):
    heads = (
        jnp.dot(x_ref[...], w_ref[...], preferred_element_type=jnp.float32)
        + b_ref[...]
    )                                                          # (TP, C_PAD) f32
    o_ref[...] = heads

    tgt = t_ref[...]                                           # (TP, C_PAD) f32
    lane = jax.lax.broadcasted_iota(jnp.int32, heads.shape, 1)
    logit_mask = lane < NUM_CLASSES
    valid = jnp.sum(jnp.where(lane == _VALID_LANE, tgt, 0.0),
                    axis=-1, keepdims=True)                    # (TP, 1), 0 on pad rows

    # numerically-stable masked log-softmax cross-entropy (f32 on VPU/EUP/XLU)
    masked_logits = jnp.where(logit_mask, heads, jnp.float32(-1e30))
    m = jnp.max(masked_logits, axis=-1, keepdims=True)
    e = jnp.where(logit_mask, jnp.exp(heads - m), 0.0)
    lse = m + jnp.log(jnp.sum(e, axis=-1, keepdims=True))
    true_logit = jnp.sum(jnp.where(logit_mask, heads * tgt, 0.0),
                         axis=-1, keepdims=True)               # tgt lanes 0..7 = one-hot
    ce_sum = jnp.sum((lse - true_logit) * valid)               # scalar

    # center MSE / offset L1 on lane-aligned targets
    err = heads - tgt
    se_sum = jnp.sum(jnp.where(lane == NUM_CLASSES, err * err, 0.0) * valid)
    l1_sum = jnp.sum(
        jnp.where((lane == NUM_CLASSES + 1) | (lane == NUM_CLASSES + 2),
                  jnp.abs(err), 0.0) * valid)

    # pack the three scalars into lanes 0..2 (duplicated over sublanes) of an
    # (8, 128) tile written at this block's row of the partials output.
    plane = jax.lax.broadcasted_iota(jnp.int32, (8, 128), 1)
    vec = jnp.where(plane == 0, ce_sum,
          jnp.where(plane == 1, se_sum,
          jnp.where(plane == 2, l1_sum, 0.0)))
    part_ref[...] = vec[None]


# ---------------------------------------------------------------------------
# Tiling choice: single block for tiny problems, 512..8192-row blocks otherwise.
# ---------------------------------------------------------------------------
def _choose_tile(p):
    nblk = pl.cdiv(p, TP_MAX)
    tp = pl.cdiv(pl.cdiv(p, nblk), 8) * 8
    return tp, nblk * tp


# ---------------------------------------------------------------------------
# Pallas wrappers
# ---------------------------------------------------------------------------
def _run_heads(x_pad, w_pad, b_pad, tp, p_pad):
    nblk = p_pad // tp
    cost = pl.CostEstimate(
        flops=2 * p_pad * K_PAD * C_PAD,
        transcendentals=0,
        bytes_accessed=(p_pad * K_PAD * 2            # x (bf16)
                        + K_PAD * C_PAD * 2          # w (bf16)
                        + C_PAD * 4                  # bias
                        + p_pad * C_PAD * 4))        # heads out (dominant)
    return pl.pallas_call(
        _heads_kernel,
        out_shape=jax.ShapeDtypeStruct((p_pad, C_PAD), jnp.float32),
        grid_spec=pltpu.PrefetchScalarGridSpec(
            num_scalar_prefetch=0,
            grid=(nblk,),
            in_specs=[
                pl.BlockSpec((tp, K_PAD), lambda i: (i, 0)),
                pl.BlockSpec((K_PAD, C_PAD), lambda i: (0, 0)),
                pl.BlockSpec((1, C_PAD), lambda i: (0, 0)),
            ],
            out_specs=pl.BlockSpec((tp, C_PAD), lambda i: (i, 0)),
        ),
        compiler_params=pltpu.CompilerParams(
            dimension_semantics=("parallel",)),
        cost_estimate=cost,
    )(x_pad, w_pad, b_pad)


def _run_fused(x_pad, w_pad, b_pad, tgt_pad, tp, p_pad):
    nblk = p_pad // tp
    cost = pl.CostEstimate(
        flops=2 * p_pad * K_PAD * C_PAD + 24 * p_pad * C_PAD,
        transcendentals=(NUM_CLASSES + 1) * p_pad,
        bytes_accessed=(p_pad * K_PAD * 2            # x (bf16)
                        + K_PAD * C_PAD * 2          # w (bf16)
                        + C_PAD * 4                  # bias
                        + p_pad * C_PAD * 4          # packed targets
                        + p_pad * C_PAD * 4          # heads out (dominant)
                        + nblk * 8 * 128 * 4))       # loss partials
    return pl.pallas_call(
        _fused_kernel,
        out_shape=(
            jax.ShapeDtypeStruct((p_pad, C_PAD), jnp.float32),
            jax.ShapeDtypeStruct((nblk, 8, 128), jnp.float32),
        ),
        grid_spec=pltpu.PrefetchScalarGridSpec(
            num_scalar_prefetch=0,
            grid=(nblk,),
            in_specs=[
                pl.BlockSpec((tp, K_PAD), lambda i: (i, 0)),
                pl.BlockSpec((K_PAD, C_PAD), lambda i: (0, 0)),
                pl.BlockSpec((1, C_PAD), lambda i: (0, 0)),
                pl.BlockSpec((tp, C_PAD), lambda i: (i, 0)),
            ],
            out_specs=(
                pl.BlockSpec((tp, C_PAD), lambda i: (i, 0)),
                pl.BlockSpec((1, 8, 128), lambda i: (i, 0, 0)),
            ),
        ),
        compiler_params=pltpu.CompilerParams(
            dimension_semantics=("parallel",)),
        cost_estimate=cost,
    )(x_pad, w_pad, b_pad, tgt_pad)


# ---------------------------------------------------------------------------
# Parameter init (deterministic, in-script)
# ---------------------------------------------------------------------------
def init_params():
    kw, kb = jax.random.split(jax.random.PRNGKey(42))
    w = 0.1 * jax.random.normal(kw, (C_IN, C_TOT), jnp.float32)
    b = 0.01 * jax.random.normal(kb, (C_TOT,), jnp.float32)
    return {"w": w, "b": b}


# ---------------------------------------------------------------------------
# MetaArchitectureWrapper.forward equivalent
# ---------------------------------------------------------------------------
@functools.partial(jax.jit, static_argnames=("with_targets",))
def meta_arch_forward(x, params, targets=None, with_targets=False):
    n, c, h, w = x.shape
    p = n * h * w
    tp, p_pad = _choose_tile(p)                               # tail-safe tiling

    # NCHW -> (P, C) channels-last; K padded to 16 (not 128); bf16 MXU operands
    x_flat = jnp.transpose(x, (0, 2, 3, 1)).reshape(p, c)
    x_pad = jnp.pad(x_flat, ((0, p_pad - p), (0, K_PAD - c))).astype(jnp.bfloat16)
    w_pad = jnp.pad(params["w"],
                    ((0, K_PAD - c), (0, C_PAD - C_TOT))).astype(jnp.bfloat16)
    b_pad = jnp.pad(params["b"].reshape(1, C_TOT), ((0, 0), (0, C_PAD - C_TOT)))

    if with_targets:
        # targets packed lane-aligned with the heads slab (see layout at top)
        labels = targets["semantic"].reshape(p)
        onehot = jax.nn.one_hot(labels, NUM_CLASSES, dtype=jnp.float32)
        ctr_t = jnp.transpose(targets["center"], (0, 2, 3, 1)).reshape(p, 1)
        off_t = jnp.transpose(targets["offset"], (0, 2, 3, 1)).reshape(p, 2)
        valid = jnp.ones((p, 1), jnp.float32)
        tgt = jnp.concatenate(
            [onehot, ctr_t.astype(jnp.float32), off_t.astype(jnp.float32), valid,
             jnp.zeros((p, C_PAD - (NUM_CLASSES + 4)), jnp.float32)], axis=1)
        tgt_pad = jnp.pad(tgt, ((0, p_pad - p), (0, 0)))      # padded rows: valid=0
        heads, parts = _run_fused(x_pad, w_pad, b_pad, tgt_pad, tp, p_pad)
    else:
        heads = _run_heads(x_pad, w_pad, b_pad, tp, p_pad)
        parts = None

    # drop tail padding; slice the narrow heads before any reshape/transpose
    heads = heads[:p]                                         # (P, 16) f32
    sem_flat = heads[:, :NUM_CLASSES]                         # (P, NUM_CLASSES)
    ctr_flat = heads[:, NUM_CLASSES:NUM_CLASSES + 1]          # (P, 1)
    off_flat = heads[:, NUM_CLASSES + 1:NUM_CLASSES + 3]      # (P, 2)

    def to_nchw(a, ch):
        return jnp.transpose(a.reshape(n, h, w, ch), (0, 3, 1, 2))

    session = {
        "semantic_pred": to_nchw(sem_flat, NUM_CLASSES),
        "center_pred": to_nchw(ctr_flat, 1),
        "offset_pred": to_nchw(off_flat, 2),
        "image": x,
    }

    if not with_targets:
        return session

    for key, value in targets.items():
        session[key + "_truth"] = value

    totals = jnp.sum(parts, axis=0)                           # (8, 128); sublanes dup'd
    semantic_loss = totals[0, 0] / p                          # mean CE over pixels
    center_loss = totals[0, 1] / p                            # mean squared error
    offset_loss = totals[0, 2] / (p * 2)                      # mean absolute error

    session["semantic_loss"] = semantic_loss
    session["center_loss"] = center_loss
    session["offset_loss"] = offset_loss
    session["loss"] = (W_SEM * semantic_loss
                       + W_CTR * center_loss
                       + W_OFF * offset_loss)
    return session


# ---------------------------------------------------------------------------
# Main
# ---------------------------------------------------------------------------
if __name__ == "__main__":
    key = jax.random.PRNGKey(0)
    kx, ks, kc, ko = jax.random.split(key, 4)

    x = jax.random.normal(kx, (N, C_IN, H, W), jnp.float32)
    targets = {
        "semantic": jax.random.randint(ks, (N, H, W), 0, NUM_CLASSES, jnp.int32),
        "center": jax.random.uniform(kc, (N, 1, H, W), jnp.float32),
        "offset": jax.random.normal(ko, (N, 2, H, W), jnp.float32),
    }

    params = init_params()

    # inference path (no targets): returns the session of predictions
    session = meta_arch_forward(x, params)
    jax.block_until_ready(session["semantic_pred"])

    # training path (with targets): returns session with losses
    session = meta_arch_forward(x, params, targets=targets, with_targets=True)
    jax.block_until_ready(session["loss"])

    assert session["semantic_pred"].shape == (N, NUM_CLASSES, H, W)
    assert session["center_pred"].shape == (N, 1, H, W)
    assert session["offset_pred"].shape == (N, 2, H, W)
    assert session["loss"].shape == ()
    assert bool(jnp.isfinite(session["loss"]))

    print("KERNEL_OK")
</pallas_src>

<mosaic_0001>
module attributes {stable_mosaic.version = 11 : i64} {
  func.func @_heads_kernel(%arg0: i32, %arg1: memref<512x16xbf16, #tpu.memory_space<vmem>>, %arg2: memref<16x16xbf16, #tpu.memory_space<vmem>>, %arg3: memref<1x16xf32, #tpu.memory_space<vmem>>, %arg4: memref<512x16xf32, #tpu.memory_space<vmem>>) attributes {dimension_semantics = [#tpu.dimension_semantics<parallel>], iteration_bounds = array<i64: 1>, scalar_prefetch = 0 : i64, scratch_operands = 0 : i64, tpu.core_type = #tpu.core_type<tc>, window_params = [{transform_indices = @transform_0, window_bounds = array<i64: 512, 16>}, {pipeline_mode = #tpu.pipeline_mode<synchronous>, transform_indices = @transform_1, window_bounds = array<i64: 16, 16>}, {pipeline_mode = #tpu.pipeline_mode<synchronous>, transform_indices = @transform_2, window_bounds = array<i64: 1, 16>}, {transform_indices = @transform_3, window_bounds = array<i64: 512, 16>}]} {
    %c0 = arith.constant 0 : index
    %c0_0 = arith.constant 0 : index
    %0 = vector.load %arg1[%c0, %c0_0] : memref<512x16xbf16, #tpu.memory_space<vmem>>, vector<512x16xbf16>
    %c0_1 = arith.constant 0 : index
    %c0_2 = arith.constant 0 : index
    %1 = vector.load %arg2[%c0_1, %c0_2] : memref<16x16xbf16, #tpu.memory_space<vmem>>, vector<16x16xbf16>
    %cst = arith.constant dense<0.000000e+00> : vector<512x16xf32>
    %2 = tpu.matmul %0, %1, %cst {dimension_numbers = #tpu.dot_dimension_numbers<[1], [0], [0], [1], [0, 0, 1, 1], [], []>} : vector<512x16xbf16>, vector<16x16xbf16>, vector<512x16xf32> -> vector<512x16xf32>
    %c0_3 = arith.constant 0 : index
    %c0_4 = arith.constant 0 : index
    %3 = vector.load %arg3[%c0_3, %c0_4] : memref<1x16xf32, #tpu.memory_space<vmem>>, vector<1x16xf32>
    %4 = vector.broadcast %3 : vector<1x16xf32> to vector<512x16xf32>
    %5 = arith.addf %2, %4 : vector<512x16xf32>
    %c0_5 = arith.constant 0 : index
    %c0_6 = arith.constant 0 : index
    %6 = vector.load %arg4[%c0_5, %c0_6] : memref<512x16xf32, #tpu.memory_space<vmem>>, vector<512x16xf32>
    tpu.vector_store %arg4[%c0_5, %c0_6], %5 {strides = array<i32>} : memref<512x16xf32, #tpu.memory_space<vmem>>, vector<512x16xf32>,
    return
  }
  func.func @transform_0(%arg0: i32) -> (i32, i32) {
    %c0_i32 = arith.constant 0 : i32
    %c0_i32_0 = arith.constant 0 : i32
    return %arg0, %c0_i32 : i32, i32
  }
  func.func @transform_1(%arg0: i32) -> (i32, i32) {
    %c0_i32 = arith.constant 0 : i32
    %c0_i32_0 = arith.constant 0 : i32
    %c0_i32_1 = arith.constant 0 : i32
    return %c0_i32, %c0_i32_0 : i32, i32
  }
  func.func @transform_2(%arg0: i32) -> (i32, i32) {
    %c0_i32 = arith.constant 0 : i32
    %c0_i32_0 = arith.constant 0 : i32
    %c0_i32_1 = arith.constant 0 : i32
    return %c0_i32, %c0_i32_0 : i32, i32
  }
  func.func @transform_3(%arg0: i32) -> (i32, i32) {
    %c0_i32 = arith.constant 0 : i32
    %c0_i32_0 = arith.constant 0 : i32
    return %arg0, %c0_i32 : i32, i32
  }
}

</mosaic_0001>

<llo_original>
// kernel: meta_arch_forward.1
$region0: #{meta_arch_forward.1}
  #allocation0 [shape = 'u32[]', space=smem, size = 0x4, offset = 0x4, fixed_abs, tag = 'smem constant byte address 0x4 - core index']
  #allocation1 [shape = 'u32[144,128]{1,0:T(1,128)}', space=vmem, size = 0x12000, scoped, tag = 'internal scratch']
  %s0 = inlined_call_operand.vmem [shape: bf16[512,16], index: 0, kind: input, shape index: {}]
  %s1 = inlined_call_operand.vmem [shape: bf16[16,16], index: 1, kind: input, shape index: {}]
  %s2 = inlined_call_operand.vmem [shape: f32[1,16], index: 2, kind: input, shape index: {}]
  %s3 = inlined_call_operand.vmem [shape: f32[512,16], index: 3, kind: output, shape index: {}]
  %s4 = sld [smem:[#allocation0]]
  $region22: #{meta_arch_forward.1} parent=0
    _
  %s6 = ssub.s32 1, %s4
  %s7 = scalar_select 0, %s6, %s4
  // Predicated region
  $region2: #{meta_arch_forward.1} parent=0 // pred_check
    _
  $region3: #{meta_arch_forward.1} parent=0 // pred_check_branch
    %9 = sbr.rel (0) target = $region5
  $region4: #{meta_arch_forward.1} parent=0 // pred_region
    _
  $region5: #{meta_arch_forward.1} parent=0 // pred_fallthru
    _
  // Predicated region
  $region6: #{meta_arch_forward.1} parent=0 // pred_check
    _
  $region7: #{meta_arch_forward.1} parent=0 // pred_check_branch
    %11 = sbr.rel (0) target = $region9
  $region8: #{meta_arch_forward.1} parent=0 // pred_region
    _
  $region9: #{meta_arch_forward.1} parent=0 // pred_fallthru
    _
  // Predicated region
  $region10: #{meta_arch_forward.1} parent=0 // pred_check
    _
  $region11: #{meta_arch_forward.1} parent=0 // pred_check_branch
    %13 = sbr.rel (0) target = $region13
  $region12: #{meta_arch_forward.1} parent=0 // pred_region
    _
  $region13: #{meta_arch_forward.1} parent=0 // pred_fallthru
    _
  %v15 = vld [vmem:[%s0] sm:$0xf]
  %v16 = vld [vmem:[%s0 + $0x4] sm:$0xf]
  %v17 = vld [vmem:[%s0 + $0x8] sm:$0xf]
  %v18 = vld [vmem:[%s0 + $0xc] sm:$0xf]
  %v19 = vld [vmem:[%s0 + $0x10] sm:$0xf]
  %v20 = vld [vmem:[%s0 + $0x14] sm:$0xf]
  %v21 = vld [vmem:[%s0 + $0x18] sm:$0xf]
  %v22 = vld [vmem:[%s0 + $0x1c] sm:$0xf]
  %v23 = vld [vmem:[%s0 + $0x20] sm:$0xf]
  %v24 = vld [vmem:[%s0 + $0x24] sm:$0xf]
  %v25 = vld [vmem:[%s0 + $0x28] sm:$0xf]
  %v26 = vld [vmem:[%s0 + $0x2c] sm:$0xf]
  %v27 = vld [vmem:[%s0 + $0x30] sm:$0xf]
  %v28 = vld [vmem:[%s0 + $0x34] sm:$0xf]
  %v29 = vld [vmem:[%s0 + $0x38] sm:$0xf]
  %v30 = vld [vmem:[%s0 + $0x3c] sm:$0xf]
  %v31 = vld [vmem:[%s0 + $0x40] sm:$0xf]
  %v32 = vld [vmem:[%s0 + $0x44] sm:$0xf]
  %v33 = vld [vmem:[%s0 + $0x48] sm:$0xf]
  %v34 = vld [vmem:[%s0 + $0x4c] sm:$0xf]
  %v35 = vld [vmem:[%s0 + $0x50] sm:$0xf]
  %v36 = vld [vmem:[%s0 + $0x54] sm:$0xf]
  %v37 = vld [vmem:[%s0 + $0x58] sm:$0xf]
  %v38 = vld [vmem:[%s0 + $0x5c] sm:$0xf]
  %v39 = vld [vmem:[%s0 + $0x60] sm:$0xf]
  %v40 = vld [vmem:[%s0 + $0x64] sm:$0xf]
  %v41 = vld [vmem:[%s0 + $0x68] sm:$0xf]
  %v42 = vld [vmem:[%s0 + $0x6c] sm:$0xf]
  %v43 = vld [vmem:[%s0 + $0x70] sm:$0xf]
  %v44 = vld [vmem:[%s0 + $0x74] sm:$0xf]
  %v45 = vld [vmem:[%s0 + $0x78] sm:$0xf]
  %v46 = vld [vmem:[%s0 + $0x7c] sm:$0xf]
  %v47 = vld [vmem:[%s0 + $0x80] sm:$0xf]
  %v48 = vld [vmem:[%s0 + $0x84] sm:$0xf]
  %v49 = vld [vmem:[%s0 + $0x88] sm:$0xf]
  %v50 = vld [vmem:[%s0 + $0x8c] sm:$0xf]
  %v51 = vld [vmem:[%s0 + $0x90] sm:$0xf]
  %v52 = vld [vmem:[%s0 + $0x94] sm:$0xf]
  %v53 = vld [vmem:[%s0 + $0x98] sm:$0xf]
  %v54 = vld [vmem:[%s0 + $0x9c] sm:$0xf]
  %v55 = vld [vmem:[%s0 + $0xa0] sm:$0xf]
  %v56 = vld [vmem:[%s0 + $0xa4] sm:$0xf]
  %v57 = vld [vmem:[%s0 + $0xa8] sm:$0xf]
  %v58 = vld [vmem:[%s0 + $0xac] sm:$0xf]
  %v59 = vld [vmem:[%s0 + $0xb0] sm:$0xf]
  %v60 = vld [vmem:[%s0 + $0xb4] sm:$0xf]
  %v61 = vld [vmem:[%s0 + $0xb8] sm:$0xf]
  %v62 = vld [vmem:[%s0 + $0xbc] sm:$0xf]
  %v63 = vld [vmem:[%s0 + $0xc0] sm:$0xf]
  %v64 = vld [vmem:[%s0 + $0xc4] sm:$0xf]
  %v65 = vld [vmem:[%s0 + $0xc8] sm:$0xf]
  %v66 = vld [vmem:[%s0 + $0xcc] sm:$0xf]
  %v67 = vld [vmem:[%s0 + $0xd0] sm:$0xf]
  %v68 = vld [vmem:[%s0 + $0xd4] sm:$0xf]
  %v69 = vld [vmem:[%s0 + $0xd8] sm:$0xf]
  %v70 = vld [vmem:[%s0 + $0xdc] sm:$0xf]
  %v71 = vld [vmem:[%s0 + $0xe0] sm:$0xf]
  %v72 = vld [vmem:[%s0 + $0xe4] sm:$0xf]
  %v73 = vld [vmem:[%s0 + $0xe8] sm:$0xf]
  %v74 = vld [vmem:[%s0 + $0xec] sm:$0xf]
  %v75 = vld [vmem:[%s0 + $0xf0] sm:$0xf]
  %v76 = vld [vmem:[%s0 + $0xf4] sm:$0xf]
  %v77 = vld [vmem:[%s0 + $0xf8] sm:$0xf]
  %v78 = vld [vmem:[%s0 + $0xfc] sm:$0xf]
  %v79 = vld [vmem:[%s1] sm:$0xf]
  %v80 = vld [vmem:[%s1 + $0x4] sm:$0xf]
  %v81 = vld [vmem:[%s2] sm:$0x1]
  %v83 = vlaneseq
  %v84 = vshrl.u32 %v83, 7
  %v85 = vsub.s32 0, %v84
  %v86 = vrot.slane %v81, %v85
  %v152 = vunpack.c.l.b16 %v15
  %v153 = vunpack.c.l.b16 %v16
  %v154 = vunpack.c.l.b16 %v17
  %v155 = vunpack.c.l.b16 %v18
  %v156 = vunpack.c.l.b16 %v19
  %v157 = vunpack.c.l.b16 %v20
  %v158 = vunpack.c.l.b16 %v21
  %v159 = vunpack.c.l.b16 %v22
  %v160 = vunpack.c.l.b16 %v23
  %v161 = vunpack.c.l.b16 %v24
  %v162 = vunpack.c.l.b16 %v25
  %v163 = vunpack.c.l.b16 %v26
  %v164 = vunpack.c.l.b16 %v27
  %v165 = vunpack.c.l.b16 %v28
  %v166 = vunpack.c.l.b16 %v29
  %v167 = vunpack.c.l.b16 %v30
  %v168 = vunpack.c.l.b16 %v31
  %v169 = vunpack.c.l.b16 %v32
  %v170 = vunpack.c.l.b16 %v33
  %v171 = vunpack.c.l.b16 %v34
  %v172 = vunpack.c.l.b16 %v35
  %v173 = vunpack.c.l.b16 %v36
  %v174 = vunpack.c.l.b16 %v37
  %v175 = vunpack.c.l.b16 %v38
  %v176 = vunpack.c.l.b16 %v39
  %v177 = vunpack.c.l.b16 %v40
  %v178 = vunpack.c.l.b16 %v41
  %v179 = vunpack.c.l.b16 %v42
  %v180 = vunpack.c.l.b16 %v43
  %v181 = vunpack.c.l.b16 %v44
  %v182 = vunpack.c.l.b16 %v45
  %v183 = vunpack.c.l.b16 %v46
  %v184 = vunpack.c.l.b16 %v47
  %v185 = vunpack.c.l.b16 %v48
  %v186 = vunpack.c.l.b16 %v49
  %v187 = vunpack.c.l.b16 %v50
  %v188 = vunpack.c.l.b16 %v51
  %v189 = vunpack.c.l.b16 %v52
  %v190 = vunpack.c.l.b16 %v53
  %v191 = vunpack.c.l.b16 %v54
  %v192 = vunpack.c.l.b16 %v55
  %v193 = vunpack.c.l.b16 %v56
  %v194 = vunpack.c.l.b16 %v57
  %v195 = vunpack.c.l.b16 %v58
  %v196 = vunpack.c.l.b16 %v59
  %v197 = vunpack.c.l.b16 %v60
  %v198 = vunpack.c.l.b16 %v61
  %v199 = vunpack.c.l.b16 %v62
  %v200 = vunpack.c.l.b16 %v63
  %v201 = vunpack.c.l.b16 %v64
  %v202 = vunpack.c.l.b16 %v65
  %v203 = vunpack.c.l.b16 %v66
  %v204 = vunpack.c.l.b16 %v67
  %v205 = vunpack.c.l.b16 %v68
  %v206 = vunpack.c.l.b16 %v69
  %v207 = vunpack.c.l.b16 %v70
  %v208 = vunpack.c.l.b16 %v71
  %v209 = vunpack.c.l.b16 %v72
  %v210 = vunpack.c.l.b16 %v73
  %v211 = vunpack.c.l.b16 %v74
  %v212 = vunpack.c.l.b16 %v75
  %v213 = vunpack.c.l.b16 %v76
  %v214 = vunpack.c.l.b16 %v77
  %v215 = vunpack.c.l.b16 %v78
  %v216 = vpack.c.b16 %v153, %v152
  %v217 = vpack.c.b16 %v155, %v154
  %v218 = vpack.c.b16 %v157, %v156
  %v219 = vpack.c.b16 %v159, %v158
  %v220 = vpack.c.b16 %v161, %v160
  %v221 = vpack.c.b16 %v163, %v162
  %v222 = vpack.c.b16 %v165, %v164
  %v223 = vpack.c.b16 %v167, %v166
  %v224 = vpack.c.b16 %v169, %v168
  %v225 = vpack.c.b16 %v171, %v170
  %v226 = vpack.c.b16 %v173, %v172
  %v227 = vpack.c.b16 %v175, %v174
  %v228 = vpack.c.b16 %v177, %v176
  %v229 = vpack.c.b16 %v179, %v178
  %v230 = vpack.c.b16 %v181, %v180
  %v231 = vpack.c.b16 %v183, %v182
  %v232 = vpack.c.b16 %v185, %v184
  %v233 = vpack.c.b16 %v187, %v186
  %v234 = vpack.c.b16 %v189, %v188
  %v235 = vpack.c.b16 %v191, %v190
  %v236 = vpack.c.b16 %v193, %v192
  %v237 = vpack.c.b16 %v195, %v194
  %v238 = vpack.c.b16 %v197, %v196
  %v239 = vpack.c.b16 %v199, %v198
  %v240 = vpack.c.b16 %v201, %v200
  %v241 = vpack.c.b16 %v203, %v202
  %v242 = vpack.c.b16 %v205, %v204
  %v243 = vpack.c.b16 %v207, %v206
  %v244 = vpack.c.b16 %v209, %v208
  %v245 = vpack.c.b16 %v211, %v210
  %v246 = vpack.c.b16 %v213, %v212
  %v247 = vpack.c.b16 %v215, %v214
  %v250 = vunpack.c.l.b16 %v79
  %v251 = vunpack.c.l.b16 %v80
  %v252 = vpack.c.b16 %v251, %v250
  %vm254 = vcmask 130048
  %v256 = vsel %vm254, %v216, 0
  %v259 = vsel %vm254, %v217, 0
  %v262 = vsel %vm254, %v218, 0
  %v265 = vsel %vm254, %v219, 0
  %v268 = vsel %vm254, %v220, 0
  %v271 = vsel %vm254, %v221, 0
  %v274 = vsel %vm254, %v222, 0
  %v277 = vsel %vm254, %v223, 0
  %v280 = vsel %vm254, %v224, 0
  %v283 = vsel %vm254, %v225, 0
  %v286 = vsel %vm254, %v226, 0
  %v289 = vsel %vm254, %v227, 0
  %v292 = vsel %vm254, %v228, 0
  %v295 = vsel %vm254, %v229, 0
  %v298 = vsel %vm254, %v230, 0
  %v301 = vsel %vm254, %v231, 0
  %v304 = vsel %vm254, %v232, 0
  %v307 = vsel %vm254, %v233, 0
  %v310 = vsel %vm254, %v234, 0
  %v313 = vsel %vm254, %v235, 0
  %v316 = vsel %vm254, %v236, 0
  %v319 = vsel %vm254, %v237, 0
  %v322 = vsel %vm254, %v238, 0
  %v325 = vsel %vm254, %v239, 0
  %v328 = vsel %vm254, %v240, 0
  %v331 = vsel %vm254, %v241, 0
  %v334 = vsel %vm254, %v242, 0
  %v337 = vsel %vm254, %v243, 0
  %v340 = vsel %vm254, %v244, 0
  %v343 = vsel %vm254, %v245, 0
  %v346 = vsel %vm254, %v246, 0
  %v349 = vsel %vm254, %v247, 0
  %351 = vmatprep.subr.bf16.mxu0 0
  %352 = vmatpush1.bf16.msra.mxu0 %v252
  %353 = vmatprep.subr.bf16.mxu0 0
  %354 = vmatpush1.bf16.msra.mxu0 0
  %355 = vmatprep.subr.bf16.mxu0 0
  %356 = vmatpush1.bf16.msra.mxu0 0
  %357 = vmatprep.subr.bf16.mxu0 0
  %358 = vmatpush1.bf16.msra.mxu0 0
  %359 = vmatprep.subr.bf16.mxu0 0
  %360 = vmatpush1.bf16.msra.mxu0 0
  %361 = vmatprep.subr.bf16.mxu0 0
  %362 = vmatpush1.bf16.msra.mxu0 0
  %363 = vmatprep.subr.bf16.mxu0 0
  %364 = vmatpush1.bf16.msra.mxu0 0
  %365 = vmatprep.subr.bf16.mxu0 0
  %366 = vmatpush1.bf16.msra.mxu0 0
  %367 = vmatprep.subr.bf16.mxu0 0
  %368 = vmatpush1.bf16.msra.mxu0 0
  %369 = vmatprep.subr.bf16.mxu0 0
  %370 = vmatpush1.bf16.msra.mxu0 0
  %371 = vmatprep.subr.bf16.mxu0 0
  %372 = vmatpush1.bf16.msra.mxu0 0
  %373 = vmatprep.subr.bf16.mxu0 0
  %374 = vmatpush1.bf16.msra.mxu0 0
  %375 = vmatprep.subr.bf16.mxu0 0
  %376 = vmatpush1.bf16.msra.mxu0 0
  %377 = vmatprep.subr.bf16.mxu0 0
  %378 = vmatpush1.bf16.msra.mxu0 0
  %379 = vmatprep.subr.bf16.mxu0 0
  %380 = vmatpush1.bf16.msra.mxu0 0
  %381 = vmatprep.subr.bf16.mxu0 0
  %382 = vmatpush1.bf16.msra.mxu0 0
  %383 = vmatprep.mubr.bf16.mxu0 0
  %384 = vmatmul.mubr.bf16.gmra.mrb[0].mxu0 %v256
  %v385 = vpop.f32.mrb[0].mxu0
  %v386 = vadd.f32 %v86, %v385
  %v387 = vpop.f32.mrb[0].mxu0
  %v388 = vpop.f32.mrb[0].mxu0
  %v389 = vadd.f32 %v86, %v388
  %v390 = vpop.f32.mrb[0].mxu0
  %391 = vmatprep.mubr.bf16.mxu0 0
  %392 = vmatmul.mubr.bf16.gmra.mrb[0].mxu0 %v259
  %v393 = vpop.f32.mrb[0].mxu0
  %v394 = vadd.f32 %v86, %v393
  %v395 = vpop.f32.mrb[0].mxu0
  %v396 = vpop.f32.mrb[0].mxu0
  %v397 = vadd.f32 %v86, %v396
  %v398 = vpop.f32.mrb[0].mxu0
  %399 = vmatprep.mubr.bf16.mxu0 0
  %400 = vmatmul.mubr.bf16.gmra.mrb[0].mxu0 %v262
  %v401 = vpop.f32.mrb[0].mxu0
  %v402 = vadd.f32 %v86, %v401
  %v403 = vpop.f32.mrb[0].mxu0
  %v404 = vpop.f32.mrb[0].mxu0
  %v405 = vadd.f32 %v86, %v404
  %v406 = vpop.f32.mrb[0].mxu0
  %407 = vmatprep.mubr.bf16.mxu0 0
  %408 = vmatmul.mubr.bf16.gmra.mrb[0].mxu0 %v265
  %v409 = vpop.f32.mrb[0].mxu0
  %v410 = vadd.f32 %v86, %v409
  %v411 = vpop.f32.mrb[0].mxu0
  %v412 = vpop.f32.mrb[0].mxu0
  %v413 = vadd.f32 %v86, %v412
  %v414 = vpop.f32.mrb[0].mxu0
  %415 = vmatprep.mubr.bf16.mxu0 0
  %416 = vmatmul.mubr.bf16.gmra.mrb[0].mxu0 %v268
  %v417 = vpop.f32.mrb[0].mxu0
  %v418 = vadd.f32 %v86, %v417
  %v419 = vpop.f32.mrb[0].mxu0
  %v420 = vpop.f32.mrb[0].mxu0
  %v421 = vadd.f32 %v86, %v420
  %v422 = vpop.f32.mrb[0].mxu0
  %423 = vmatprep.mubr.bf16.mxu0 0
  %424 = vmatmul.mubr.bf16.gmra.mrb[0].mxu0 %v271
  %v425 = vpop.f32.mrb[0].mxu0
  %v426 = vadd.f32 %v86, %v425
  %v427 = vpop.f32.mrb[0].mxu0
  %v428 = vpop.f32.mrb[0].mxu0
  %v429 = vadd.f32 %v86, %v428
  %v430 = vpop.f32.mrb[0].mxu0
  %431 = vmatprep.mubr.bf16.mxu0 0
  %432 = vmatmul.mubr.bf16.gmra.mrb[0].mxu0 %v274
  %v433 = vpop.f32.mrb[0].mxu0
  %v434 = vadd.f32 %v86, %v433
  %v435 = vpop.f32.mrb[0].mxu0
  %v436 = vpop.f32.mrb[0].mxu0
  %v437 = vadd.f32 %v86, %v436
  %v438 = vpop.f32.mrb[0].mxu0
  %439 = vmatprep.mubr.bf16.mxu0 0
  %440 = vmatmul.mubr.bf16.gmra.mrb[0].mxu0 %v277
  %v441 = vpop.f32.mrb[0].mxu0
  %v442 = vadd.f32 %v86, %v441
  %v443 = vpop.f32.mrb[0].mxu0
  %v444 = vpop.f32.mrb[0].mxu0
  %v445 = vadd.f32 %v86, %v444
  %v446 = vpop.f32.mrb[0].mxu0
  %447 = vmatprep.mubr.bf16.mxu0 0
  %448 = vmatmul.mubr.bf16.gmra.mrb[0].mxu0 %v280
  %v449 = vpop.f32.mrb[0].mxu0
  %v450 = vadd.f32 %v86, %v449
  %v451 = vpop.f32.mrb[0].mxu0
  %v452 = vpop.f32.mrb[0].mxu0
  %v453 = vadd.f32 %v86, %v452
  %v454 = vpop.f32.mrb[0].mxu0
  %455 = vmatprep.mubr.bf16.mxu0 0
  %456 = vmatmul.mubr.bf16.gmra.mrb[0].mxu0 %v283
  %v457 = vpop.f32.mrb[0].mxu0
  %v458 = vadd.f32 %v86, %v457
  %v459 = vpop.f32.mrb[0].mxu0
  %v460 = vpop.f32.mrb[0].mxu0
  %v461 = vadd.f32 %v86, %v460
  %v462 = vpop.f32.mrb[0].mxu0
  %463 = vmatprep.mubr.bf16.mxu0 0
  %464 = vmatmul.mubr.bf16.gmra.mrb[0].mxu0 %v286
  %v465 = vpop.f32.mrb[0].mxu0
  %v466 = vadd.f32 %v86, %v465
  %v467 = vpop.f32.mrb[0].mxu0
  %v468 = vpop.f32.mrb[0].mxu0
  %v469 = vadd.f32 %v86, %v468
  %v470 = vpop.f32.mrb[0].mxu0
  %471 = vmatprep.mubr.bf16.mxu0 0
  %472 = vmatmul.mubr.bf16.gmra.mrb[0].mxu0 %v289
  %v473 = vpop.f32.mrb[0].mxu0
  %v474 = vadd.f32 %v86, %v473
  %v475 = vpop.f32.mrb[0].mxu0
  %v476 = vpop.f32.mrb[0].mxu0
  %v477 = vadd.f32 %v86, %v476
  %v478 = vpop.f32.mrb[0].mxu0
  %479 = vmatprep.mubr.bf16.mxu0 0
  %480 = vmatmul.mubr.bf16.gmra.mrb[0].mxu0 %v292
  %v481 = vpop.f32.mrb[0].mxu0
  %v482 = vadd.f32 %v86, %v481
  %v483 = vpop.f32.mrb[0].mxu0
  %v484 = vpop.f32.mrb[0].mxu0
  %v485 = vadd.f32 %v86, %v484
  %v486 = vpop.f32.mrb[0].mxu0
  %487 = vmatprep.mubr.bf16.mxu0 0
  %488 = vmatmul.mubr.bf16.gmra.mrb[0].mxu0 %v295
  %v489 = vpop.f32.mrb[0].mxu0
  %v490 = vadd.f32 %v86, %v489
  %v491 = vpop.f32.mrb[0].mxu0
  %v492 = vpop.f32.mrb[0].mxu0
  %v493 = vadd.f32 %v86, %v492
  %v494 = vpop.f32.mrb[0].mxu0
  %495 = vmatprep.mubr.bf16.mxu0 0
  %496 = vmatmul.mubr.bf16.gmra.mrb[0].mxu0 %v298
  %v497 = vpop.f32.mrb[0].mxu0
  %v498 = vadd.f32 %v86, %v497
  %v499 = vpop.f32.mrb[0].mxu0
  %v500 = vpop.f32.mrb[0].mxu0
  %v501 = vadd.f32 %v86, %v500
  %v502 = vpop.f32.mrb[0].mxu0
  %503 = vmatprep.mubr.bf16.mxu0 0
  %504 = vmatmul.mubr.bf16.gmra.mrb[0].mxu0 %v301
  %v505 = vpop.f32.mrb[0].mxu0
  %v506 = vadd.f32 %v86, %v505
  %v507 = vpop.f32.mrb[0].mxu0
  %v508 = vpop.f32.mrb[0].mxu0
  %v509 = vadd.f32 %v86, %v508
  %v510 = vpop.f32.mrb[0].mxu0
  %511 = vmatprep.mubr.bf16.mxu0 0
  %512 = vmatmul.mubr.bf16.gmra.mrb[0].mxu0 %v304
  %v513 = vpop.f32.mrb[0].mxu0
  %v514 = vadd.f32 %v86, %v513
  %v515 = vpop.f32.mrb[0].mxu0
  %v516 = vpop.f32.mrb[0].mxu0
  %v517 = vadd.f32 %v86, %v516
  %v518 = vpop.f32.mrb[0].mxu0
  %519 = vmatprep.mubr.bf16.mxu0 0
  %520 = vmatmul.mubr.bf16.gmra.mrb[0].mxu0 %v307
  %v521 = vpop.f32.mrb[0].mxu0
  %v522 = vadd.f32 %v86, %v521
  %v523 = vpop.f32.mrb[0].mxu0
  %v524 = vpop.f32.mrb[0].mxu0
  %v525 = vadd.f32 %v86, %v524
  %v526 = vpop.f32.mrb[0].mxu0
  %527 = vmatprep.mubr.bf16.mxu0 0
  %528 = vmatmul.mubr.bf16.gmra.mrb[0].mxu0 %v310
  %v529 = vpop.f32.mrb[0].mxu0
  %v530 = vadd.f32 %v86, %v529
  %v531 = vpop.f32.mrb[0].mxu0
  %v532 = vpop.f32.mrb[0].mxu0
  %v533 = vadd.f32 %v86, %v532
  %v534 = vpop.f32.mrb[0].mxu0
  %535 = vmatprep.mubr.bf16.mxu0 0
  %536 = vmatmul.mubr.bf16.gmra.mrb[0].mxu0 %v313
  %v537 = vpop.f32.mrb[0].mxu0
  %v538 = vadd.f32 %v86, %v537
  %v539 = vpop.f32.mrb[0].mxu0
  %v540 = vpop.f32.mrb[0].mxu0
  %v541 = vadd.f32 %v86, %v540
  %v542 = vpop.f32.mrb[0].mxu0
  %543 = vmatprep.mubr.bf16.mxu0 0
  %544 = vmatmul.mubr.bf16.gmra.mrb[0].mxu0 %v316
  %v545 = vpop.f32.mrb[0].mxu0
  %v546 = vadd.f32 %v86, %v545
  %v547 = vpop.f32.mrb[0].mxu0
  %v548 = vpop.f32.mrb[0].mxu0
  %v549 = vadd.f32 %v86, %v548
  %v550 = vpop.f32.mrb[0].mxu0
  %551 = vmatprep.mubr.bf16.mxu0 0
  %552 = vmatmul.mubr.bf16.gmra.mrb[0].mxu0 %v319
  %v553 = vpop.f32.mrb[0].mxu0
  %v554 = vadd.f32 %v86, %v553
  %v555 = vpop.f32.mrb[0].mxu0
  %v556 = vpop.f32.mrb[0].mxu0
  %v557 = vadd.f32 %v86, %v556
  %v558 = vpop.f32.mrb[0].mxu0
  %559 = vmatprep.mubr.bf16.mxu0 0
  %560 = vmatmul.mubr.bf16.gmra.mrb[0].mxu0 %v322
  %v561 = vpop.f32.mrb[0].mxu0
  %v562 = vadd.f32 %v86, %v561
  %v563 = vpop.f32.mrb[0].mxu0
  %v564 = vpop.f32.mrb[0].mxu0
  %v565 = vadd.f32 %v86, %v564
  %v566 = vpop.f32.mrb[0].mxu0
  %567 = vmatprep.mubr.bf16.mxu0 0
  %568 = vmatmul.mubr.bf16.gmra.mrb[0].mxu0 %v325
  %v569 = vpop.f32.mrb[0].mxu0
  %v570 = vadd.f32 %v86, %v569
  %v571 = vpop.f32.mrb[0].mxu0
  %v572 = vpop.f32.mrb[0].mxu0
  %v573 = vadd.f32 %v86, %v572
  %v574 = vpop.f32.mrb[0].mxu0
  %575 = vmatprep.mubr.bf16.mxu0 0
  %576 = vmatmul.mubr.bf16.gmra.mrb[0].mxu0 %v328
  %v577 = vpop.f32.mrb[0].mxu0
  %v578 = vadd.f32 %v86, %v577
  %v579 = vpop.f32.mrb[0].mxu0
  %v580 = vpop.f32.mrb[0].mxu0
  %v581 = vadd.f32 %v86, %v580
  %v582 = vpop.f32.mrb[0].mxu0
  %583 = vmatprep.mubr.bf16.mxu0 0
  %584 = vmatmul.mubr.bf16.gmra.mrb[0].mxu0 %v331
  %v585 = vpop.f32.mrb[0].mxu0
  %v586 = vadd.f32 %v86, %v585
  %v587 = vpop.f32.mrb[0].mxu0
  %v588 = vpop.f32.mrb[0].mxu0
  %v589 = vadd.f32 %v86, %v588
  %v590 = vpop.f32.mrb[0].mxu0
  %591 = vmatprep.mubr.bf16.mxu0 0
  %592 = vmatmul.mubr.bf16.gmra.mrb[0].mxu0 %v334
  %v593 = vpop.f32.mrb[0].mxu0
  %v594 = vadd.f32 %v86, %v593
  %v595 = vpop.f32.mrb[0].mxu0
  %v596 = vpop.f32.mrb[0].mxu0
  %v597 = vadd.f32 %v86, %v596
  %v598 = vpop.f32.mrb[0].mxu0
  %599 = vmatprep.mubr.bf16.mxu0 0
  %600 = vmatmul.mubr.bf16.gmra.mrb[0].mxu0 %v337
  %v601 = vpop.f32.mrb[0].mxu0
  %v602 = vadd.f32 %v86, %v601
  %v603 = vpop.f32.mrb[0].mxu0
  %v604 = vpop.f32.mrb[0].mxu0
  %v605 = vadd.f32 %v86, %v604
  %v606 = vpop.f32.mrb[0].mxu0
  %607 = vmatprep.mubr.bf16.mxu0 0
  %608 = vmatmul.mubr.bf16.gmra.mrb[0].mxu0 %v340
  %v609 = vpop.f32.mrb[0].mxu0
  %v610 = vadd.f32 %v86, %v609
  %v611 = vpop.f32.mrb[0].mxu0
  %v612 = vpop.f32.mrb[0].mxu0
  %v613 = vadd.f32 %v86, %v612
  %v614 = vpop.f32.mrb[0].mxu0
  %615 = vmatprep.mubr.bf16.mxu0 0
  %616 = vmatmul.mubr.bf16.gmra.mrb[0].mxu0 %v343
  %v617 = vpop.f32.mrb[0].mxu0
  %v618 = vadd.f32 %v86, %v617
  %v619 = vpop.f32.mrb[0].mxu0
  %v620 = vpop.f32.mrb[0].mxu0
  %v621 = vadd.f32 %v86, %v620
  %v622 = vpop.f32.mrb[0].mxu0
  %623 = vmatprep.mubr.bf16.mxu0 0
  %624 = vmatmul.mubr.bf16.gmra.mrb[0].mxu0 %v346
  %v625 = vpop.f32.mrb[0].mxu0
  %v626 = vadd.f32 %v86, %v625
  %v627 = vpop.f32.mrb[0].mxu0
  %v628 = vpop.f32.mrb[0].mxu0
  %v629 = vadd.f32 %v86, %v628
  %v630 = vpop.f32.mrb[0].mxu0
  %631 = vmatprep.mubr.bf16.mxu0 0
  %632 = vmatmul.mubr.bf16.gmra.mrb[0].mxu0 %v349
  %v633 = vpop.f32.mrb[0].mxu0
  %v634 = vadd.f32 %v86, %v633
  %v635 = vpop.f32.mrb[0].mxu0
  %v636 = vpop.f32.mrb[0].mxu0
  %v637 = vadd.f32 %v86, %v636
  %v638 = vpop.f32.mrb[0].mxu0
  %639 = vdwg.mxu0
  %640 = vst.msk [vmem:[%s3] sm:$0xff] %vm254, %v386
  %641 = vst.msk [vmem:[%s3 + $0x8] sm:$0xff] %vm254, %v389
  %642 = vst.msk [vmem:[%s3 + $0x10] sm:$0xff] %vm254, %v394
  %643 = vst.msk [vmem:[%s3 + $0x18] sm:$0xff] %vm254, %v397
  %644 = vst.msk [vmem:[%s3 + $0x20] sm:$0xff] %vm254, %v402
  %645 = vst.msk [vmem:[%s3 + $0x28] sm:$0xff] %vm254, %v405
  %646 = vst.msk [vmem:[%s3 + $0x30] sm:$0xff] %vm254, %v410
  %647 = vst.msk [vmem:[%s3 + $0x38] sm:$0xff] %vm254, %v413
  %648 = vst.msk [vmem:[%s3 + $0x40] sm:$0xff] %vm254, %v418
  %649 = vst.msk [vmem:[%s3 + $0x48] sm:$0xff] %vm254, %v421
  %650 = vst.msk [vmem:[%s3 + $0x50] sm:$0xff] %vm254, %v426
  %651 = vst.msk [vmem:[%s3 + $0x58] sm:$0xff] %vm254, %v429
  %652 = vst.msk [vmem:[%s3 + $0x60] sm:$0xff] %vm254, %v434
  %653 = vst.msk [vmem:[%s3 + $0x68] sm:$0xff] %vm254, %v437
  %654 = vst.msk [vmem:[%s3 + $0x70] sm:$0xff] %vm254, %v442
  %655 = vst.msk [vmem:[%s3 + $0x78] sm:$0xff] %vm254, %v445
  %656 = vst.msk [vmem:[%s3 + $0x80] sm:$0xff] %vm254, %v450
  %657 = vst.msk [vmem:[%s3 + $0x88] sm:$0xff] %vm254, %v453
  %658 = vst.msk [vmem:[%s3 + $0x90] sm:$0xff] %vm254, %v458
  %659 = vst.msk [vmem:[%s3 + $0x98] sm:$0xff] %vm254, %v461
  %660 = vst.msk [vmem:[%s3 + $0xa0] sm:$0xff] %vm254, %v466
  %661 = vst.msk [vmem:[%s3 + $0xa8] sm:$0xff] %vm254, %v469
  %662 = vst.msk [vmem:[%s3 + $0xb0] sm:$0xff] %vm254, %v474
  %663 = vst.msk [vmem:[%s3 + $0xb8] sm:$0xff] %vm254, %v477
  %664 = vst.msk [vmem:[%s3 + $0xc0] sm:$0xff] %vm254, %v482
  %665 = vst.msk [vmem:[%s3 + $0xc8] sm:$0xff] %vm254, %v485
  %666 = vst.msk [vmem:[%s3 + $0xd0] sm:$0xff] %vm254, %v490
  %667 = vst.msk [vmem:[%s3 + $0xd8] sm:$0xff] %vm254, %v493
  %668 = vst.msk [vmem:[%s3 + $0xe0] sm:$0xff] %vm254, %v498
  %669 = vst.msk [vmem:[%s3 + $0xe8] sm:$0xff] %vm254, %v501
  %670 = vst.msk [vmem:[%s3 + $0xf0] sm:$0xff] %vm254, %v506
  %671 = vst.msk [vmem:[%s3 + $0xf8] sm:$0xff] %vm254, %v509
  %672 = vst.msk [vmem:[%s3 + $0x100] sm:$0xff] %vm254, %v514
  %673 = vst.msk [vmem:[%s3 + $0x108] sm:$0xff] %vm254, %v517
  %674 = vst.msk [vmem:[%s3 + $0x110] sm:$0xff] %vm254, %v522
  %675 = vst.msk [vmem:[%s3 + $0x118] sm:$0xff] %vm254, %v525
  %676 = vst.msk [vmem:[%s3 + $0x120] sm:$0xff] %vm254, %v530
  %677 = vst.msk [vmem:[%s3 + $0x128] sm:$0xff] %vm254, %v533
  %678 = vst.msk [vmem:[%s3 + $0x130] sm:$0xff] %vm254, %v538
  %679 = vst.msk [vmem:[%s3 + $0x138] sm:$0xff] %vm254, %v541
  %680 = vst.msk [vmem:[%s3 + $0x140] sm:$0xff] %vm254, %v546
  %681 = vst.msk [vmem:[%s3 + $0x148] sm:$0xff] %vm254, %v549
  %682 = vst.msk [vmem:[%s3 + $0x150] sm:$0xff] %vm254, %v554
  %683 = vst.msk [vmem:[%s3 + $0x158] sm:$0xff] %vm254, %v557
  %684 = vst.msk [vmem:[%s3 + $0x160] sm:$0xff] %vm254, %v562
  %685 = vst.msk [vmem:[%s3 + $0x168] sm:$0xff] %vm254, %v565
  %686 = vst.msk [vmem:[%s3 + $0x170] sm:$0xff] %vm254, %v570
  %687 = vst.msk [vmem:[%s3 + $0x178] sm:$0xff] %vm254, %v573
  %688 = vst.msk [vmem:[%s3 + $0x180] sm:$0xff] %vm254, %v578
  %689 = vst.msk [vmem:[%s3 + $0x188] sm:$0xff] %vm254, %v581
  %690 = vst.msk [vmem:[%s3 + $0x190] sm:$0xff] %vm254, %v586
  %691 = vst.msk [vmem:[%s3 + $0x198] sm:$0xff] %vm254, %v589
  %692 = vst.msk [vmem:[%s3 + $0x1a0] sm:$0xff] %vm254, %v594
  %693 = vst.msk [vmem:[%s3 + $0x1a8] sm:$0xff] %vm254, %v597
  %694 = vst.msk [vmem:[%s3 + $0x1b0] sm:$0xff] %vm254, %v602
  %695 = vst.msk [vmem:[%s3 + $0x1b8] sm:$0xff] %vm254, %v605
  %696 = vst.msk [vmem:[%s3 + $0x1c0] sm:$0xff] %vm254, %v610
  %697 = vst.msk [vmem:[%s3 + $0x1c8] sm:$0xff] %vm254, %v613
  %698 = vst.msk [vmem:[%s3 + $0x1d0] sm:$0xff] %vm254, %v618
  %699 = vst.msk [vmem:[%s3 + $0x1d8] sm:$0xff] %vm254, %v621
  %700 = vst.msk [vmem:[%s3 + $0x1e0] sm:$0xff] %vm254, %v626
  %701 = vst.msk [vmem:[%s3 + $0x1e8] sm:$0xff] %vm254, %v629
  %702 = vst.msk [vmem:[%s3 + $0x1f0] sm:$0xff] %vm254, %v634
  %703 = vst.msk [vmem:[%s3 + $0x1f8] sm:$0xff] %vm254, %v637
  // Predicated region
  $region14: #{meta_arch_forward.1} parent=0 // pred_check
    _
  $region15: #{meta_arch_forward.1} parent=0 // pred_check_branch
    %705 = sbr.rel (0) target = $region17
  $region16: #{meta_arch_forward.1} parent=0 // pred_region
    _
  $region17: #{meta_arch_forward.1} parent=0 // pred_fallthru
    _
  // Predicated region
  $region18: #{meta_arch_forward.1} parent=0 // pred_check
    _
  $region19: #{meta_arch_forward.1} parent=0 // pred_check_branch
    %707 = sbr.rel (0) target = $region21
  $region20: #{meta_arch_forward.1} parent=0 // pred_region
    _
  $region21: #{meta_arch_forward.1} parent=0 // pred_fallthru
    _

</llo_original>
